<compile_context>
chip_gen: v7x
topology: tpu7x:2x2x1
jax: 0.10.0
libtpu: 0.0.40
codegen_flags: <defaults>
</compile_context>

<pallas_src>
from collections import OrderedDict
from functools import lru_cache

import jax
import jax.numpy as jnp
from jax import lax
from jax.experimental import pallas as pl
from jax.experimental.pallas import tpu as pltpu

_LANES = 128
_VMEM_LIMIT_BYTES = 32 * 1024 * 1024     # safe on v5e/v6e (128 MiB) and v7x (64 MiB)
_BIG_LEAF_BYTES = 1 * 1024 * 1024        # leaves above this use the tiled grid kernel
_MAX_FUSED_TENSORS = 64                  # per fused launch (output has 128 lanes)
_MAX_FUSED_BYTES = 4 * 1024 * 1024       # total resident bytes per fused launch
_TILED_BLOCK_BYTES = 2 * 1024 * 1024     # f32 accumulator block cap for the tiled path


def _round_up(x, m):
    return ((x + m - 1) // m) * m


def _as_2d(t):
    """Flatten to 2-D so the trailing dim maps to lanes; no padding, no copy of note."""
    return t.reshape(t.shape[0], -1) if t.ndim >= 2 else t.reshape(1, -1)


# --------------------------------------------------------------------------
# Fused multi-tensor mean: one pallas_call computes the mean of every (small)
# loss tensor.  Each tensor is a whole-array VMEM block; output lane i holds
# mean(tensor_i).
# --------------------------------------------------------------------------
@lru_cache(maxsize=None)
def _build_fused_means_call(shapes, dtype_strs, counts):
    n = len(shapes)
    inv_counts = tuple(1.0 / max(c, 1) for c in counts)   # static reciprocal multiply

    def kernel(*refs):
        o_ref = refs[n]
        lane = lax.broadcasted_iota(jnp.int32, (1, _LANES), 1)
        out = jnp.zeros((1, _LANES), jnp.float32)
        for i in range(n):                                  # static unroll over losses
            s = jnp.sum(refs[i][...].astype(jnp.float32))   # cast in-kernel, f32 accum
            out = jnp.where(lane == i, s * inv_counts[i], out)
        o_ref[...] = out                                    # single lane-dense store

    return pl.pallas_call(
        kernel,
        out_shape=jax.ShapeDtypeStruct((1, _LANES), jnp.float32),
        in_specs=[pl.BlockSpec(memory_space=pltpu.MemorySpace.VMEM)] * n,
        out_specs=pl.BlockSpec(memory_space=pltpu.MemorySpace.VMEM),
        compiler_params=pltpu.CompilerParams(vmem_limit_bytes=_VMEM_LIMIT_BYTES),
    )


def fused_means(tensors):
    """Means of all tensors in one Pallas launch; returns a length-N vector."""
    t2d = [_as_2d(jnp.asarray(t)) for t in tensors]
    shapes = tuple(t.shape for t in t2d)
    dtypes = tuple(str(t.dtype) for t in t2d)
    counts = tuple(int(t.size) for t in t2d)
    call = _build_fused_means_call(shapes, dtypes, counts)
    out = call(*t2d)
    return out[0, :len(t2d)]


# --------------------------------------------------------------------------
# Tiled single-tensor mean (fallback for large loss tensors): big row tiles,
# block-shaped VMEM accumulator (pure VPU adds per step), ragged tail masked
# in-kernel, single XLU reduce + divide-by-constant only at the last step.
# --------------------------------------------------------------------------
@lru_cache(maxsize=None)
def _build_tiled_mean_call(rows, cols, dtype_str, count, block_rows):
    inv_count = 1.0 / max(count, 1)
    num_blocks = pl.cdiv(rows, block_rows)

    def kernel(x_ref, o_ref, acc_ref):
        step = pl.program_id(0)

        @pl.when(step == 0)
        def _init():
            acc_ref[...] = jnp.zeros_like(acc_ref)

        blk = x_ref[...].astype(jnp.float32)                       # (block_rows, cols)
        row = step * block_rows + lax.broadcasted_iota(
            jnp.int32, (block_rows, cols), 0)
        acc_ref[...] += jnp.where(row < rows, blk, 0.0)            # mask ragged tail; VPU only

        @pl.when(step == pl.num_programs(0) - 1)
        def _finalize():
            o_ref[0, 0] = jnp.sum(acc_ref[...]) * inv_count        # one XLU reduce, one store

    return pl.pallas_call(
        kernel,
        out_shape=jax.ShapeDtypeStruct((1, 1), jnp.float32),
        grid_spec=pltpu.PrefetchScalarGridSpec(
            num_scalar_prefetch=0,
            grid=(num_blocks,),
            in_specs=[pl.BlockSpec((block_rows, cols), lambda i: (i, 0))],
            out_specs=pl.BlockSpec((1, 1), lambda i: (0, 0)),
            scratch_shapes=[pltpu.VMEM((block_rows, cols), jnp.float32)],
        ),
        compiler_params=pltpu.CompilerParams(
            dimension_semantics=("arbitrary",),
            vmem_limit_bytes=_VMEM_LIMIT_BYTES,
        ),
    )


def tiled_mean(x, block_rows=None):
    """Mean over all elements of a (possibly large) tensor via a tiled grid reduction."""
    x2 = _as_2d(jnp.asarray(x))
    rows, cols = x2.shape
    if block_rows is None:
        # Size the row tile so the f32 accumulator block stays within budget
        # (keeps input double-buffer + scratch well under the v7x scoped VMEM).
        by_budget = max(8, (_TILED_BLOCK_BYTES // max(1, cols * 4)) // 8 * 8)
        block_rows = max(8, min(_round_up(rows, 8), by_budget, 1024))
        # TODO(synk): pathological ultra-wide rows (cols*4 >> budget) would need a 2-D tiling.
    call = _build_tiled_mean_call(rows, cols, str(x2.dtype), int(x2.size), int(block_rows))
    return call(x2)[0, 0]


def pallas_leaf_means(leaves):
    """Per-leaf means: small leaves go through one fused launch, big ones through the tiled kernel."""
    leaves = [jnp.asarray(t) for t in leaves]
    means = [None] * len(leaves)

    small = []
    for gi, t in enumerate(leaves):
        if t.size * t.dtype.itemsize > _BIG_LEAF_BYTES:
            means[gi] = tiled_mean(t)
        else:
            small.append((gi, t))

    i = 0
    while i < len(small):
        j = i + 1
        nbytes = small[i][1].size * small[i][1].dtype.itemsize
        while j < len(small) and (j - i) < _MAX_FUSED_TENSORS:
            b = small[j][1].size * small[j][1].dtype.itemsize
            if nbytes + b > _MAX_FUSED_BYTES:
                break
            nbytes += b
            j += 1
        chunk = [t for _, t in small[i:j]]
        mv = fused_means(chunk)
        for off, (gi, _) in enumerate(small[i:j]):
            means[gi] = mv[off]
        i = j
    return means


class BaseDNNPallas:
    """JAX/Pallas mirror of BaseDNN's concrete behaviour."""

    # --- forward dispatch (identical control flow to the PyTorch module) ---
    def forward(self, return_loss=True, **kwargs):
        if return_loss:
            return self.forward_train(**kwargs)
        return self.forward_test(**kwargs)

    def forward_test(self, **kwargs):
        return self.simple_test(**kwargs)

    # TODO(synk): extract_feat / forward_train / simple_test are @abstractmethod
    # in BaseDNN (no computation defined).  This synthetic concrete subclass just
    # passes through the raw per-element losses supplied in `data`, so that the
    # concrete _parse_losses / train_step path is what gets exercised.
    def forward_train(self, losses=None, mod_labels=None, **kwargs):
        return losses

    def simple_test(self, losses=None, **kwargs):
        return losses

    # --- concrete compute: _parse_losses, reductions fused into one Pallas launch ---
    def _parse_losses(self, losses):
        names, group_sizes, leaves = [], [], []
        for loss_name, loss_value in losses.items():
            if isinstance(loss_value, (list, tuple)):
                vals = list(loss_value)
            elif isinstance(loss_value, jax.Array):
                vals = [loss_value]
            else:
                raise TypeError(f'{loss_name} is not a tensor or list of tensors')
            names.append(loss_name)
            group_sizes.append(len(vals))
            leaves.extend(vals)

        leaf_means = pallas_leaf_means(leaves)

        log_vars = OrderedDict()
        idx = 0
        for name, k in zip(names, group_sizes):
            log_vars[name] = leaf_means[idx] if k == 1 else sum(leaf_means[idx:idx + k])
            idx += k

        loss = sum(v for k_, v in log_vars.items() if 'loss' in k_)
        log_vars['loss'] = loss
        # TODO(synk): torch.distributed all_reduce(loss / world_size) skipped (single host).
        # Batch the host transfer: ONE device_get / host sync for the whole logging dict.
        host_vals = jax.device_get(list(log_vars.values()))
        log_vars = OrderedDict((k, float(v)) for k, v in zip(log_vars.keys(), host_vals))
        return loss, log_vars

    def train_step(self, data, optimizer=None):
        losses = self.forward(return_loss=True, **data)
        loss, log_vars = self._parse_losses(losses)
        return dict(loss=loss, log_vars=log_vars,
                    num_samples=len(data['mod_labels']))

    def val_step(self, data, optimizer=None):
        losses = self.forward(return_loss=True, **data)
        loss, log_vars = self._parse_losses(losses)
        return dict(loss=loss, log_vars=log_vars,
                    num_samples=len(data['mod_labels']))


if __name__ == "__main__":
    key = jax.random.PRNGKey(0)
    k1, k2, k3, k4, k5 = jax.random.split(key, 5)

    batch = 2
    # Raw (pre-reduction) network outputs, as a classifier head would emit them.
    loss_cls = jax.random.uniform(k1, (batch, 16), jnp.float32)            # per-sample CE-like
    loss_aux = [jax.random.uniform(k2, (batch, 8), jnp.float32),           # list-of-tensors case
                jax.random.uniform(k3, (batch, 4), jnp.float32)]
    acc = jax.random.uniform(k4, (batch,), jnp.float32)                    # logged but NOT summed

    losses = OrderedDict(loss_cls=loss_cls, loss_aux=loss_aux, acc=acc)
    data = dict(losses=losses, mod_labels=jnp.zeros((batch,), jnp.int32))

    model = BaseDNNPallas()
    out = model.train_step(data, optimizer=None)
    loss = jax.block_until_ready(out['loss'])

    # Pure-JAX reference for _parse_losses semantics.
    ref_cls = jnp.mean(loss_cls)
    ref_aux = jnp.mean(loss_aux[0]) + jnp.mean(loss_aux[1])
    ref_loss = float(ref_cls + ref_aux)

    assert out['num_samples'] == batch
    assert abs(out['log_vars']['loss_cls'] - float(ref_cls)) < 1e-5
    assert abs(out['log_vars']['loss_aux'] - float(ref_aux)) < 1e-5
    assert abs(out['log_vars']['acc'] - float(jnp.mean(acc))) < 1e-5
    assert abs(float(loss) - ref_loss) < 1e-5

    # Exercise the tiled grid-reduction fallback (multi-step grid + ragged tail masking).
    big = jax.random.uniform(k5, (300, 200), jnp.float32)
    tm = jax.block_until_ready(tiled_mean(big, block_rows=64))
    assert abs(float(tm) - float(jnp.mean(big))) < 1e-4

    print("KERNEL_OK")
</pallas_src>

<mosaic_0001>
module attributes {stable_mosaic.version = 11 : i64} {
  func.func @kernel(%arg0: memref<2x16xf32, #tpu.memory_space<vmem>>, %arg1: memref<2x8xf32, #tpu.memory_space<vmem>>, %arg2: memref<2x4xf32, #tpu.memory_space<vmem>>, %arg3: memref<1x2xf32, #tpu.memory_space<vmem>>, %arg4: memref<1x128xf32, #tpu.memory_space<vmem>>) attributes {dimension_semantics = [], scalar_prefetch = 0 : i64, scratch_operands = 0 : i64, tpu.core_type = #tpu.core_type<tc>} {
    %0 = tpu.iota {dimensions = array<i32: 1>} : vector<1x128xi32>
    %cst = arith.constant 0.000000e+00 : f32
    %1 = vector.broadcast %cst : f32 to vector<1x128xf32>
    %c0 = arith.constant 0 : index
    %c0_0 = arith.constant 0 : index
    %2 = vector.load %arg0[%c0, %c0_0] : memref<2x16xf32, #tpu.memory_space<vmem>>, vector<2x16xf32>
    %3 = vector.shape_cast %2 : vector<2x16xf32> to vector<1x2x16xf32>
    %cst_1 = arith.constant dense<0.000000e+00> : vector<1xf32>
    %4 = vector.multi_reduction <add>, %3, %cst_1 [1, 2] : vector<1x2x16xf32> to vector<1xf32>
    %5 = vector.shape_cast %4 : vector<1xf32> to vector<1x1x1xf32>
    %6 = vector.extract %5[0, 0, 0] : f32 from vector<1x1x1xf32>
    %c0_i32 = arith.constant 0 : i32
    %7 = vector.broadcast %c0_i32 : i32 to vector<1x128xi32>
    %8 = arith.cmpi eq, %0, %7 : vector<1x128xi32>
    %cst_2 = arith.constant 3.125000e-02 : f32
    %9 = arith.mulf %6, %cst_2 : f32
    %10 = vector.broadcast %9 : f32 to vector<1x128xf32>
    %11 = arith.select %8, %10, %1 : vector<1x128xi1>, vector<1x128xf32>
    %c0_3 = arith.constant 0 : index
    %c0_4 = arith.constant 0 : index
    %12 = vector.load %arg1[%c0_3, %c0_4] : memref<2x8xf32, #tpu.memory_space<vmem>>, vector<2x8xf32>
    %13 = vector.shape_cast %12 : vector<2x8xf32> to vector<1x2x8xf32>
    %cst_5 = arith.constant dense<0.000000e+00> : vector<1xf32>
    %14 = vector.multi_reduction <add>, %13, %cst_5 [1, 2] : vector<1x2x8xf32> to vector<1xf32>
    %15 = vector.shape_cast %14 : vector<1xf32> to vector<1x1x1xf32>
    %16 = vector.extract %15[0, 0, 0] : f32 from vector<1x1x1xf32>
    %c1_i32 = arith.constant 1 : i32
    %17 = vector.broadcast %c1_i32 : i32 to vector<1x128xi32>
    %18 = arith.cmpi eq, %0, %17 : vector<1x128xi32>
    %cst_6 = arith.constant 6.250000e-02 : f32
    %19 = arith.mulf %16, %cst_6 : f32
    %20 = vector.broadcast %19 : f32 to vector<1x128xf32>
    %21 = arith.select %18, %20, %11 : vector<1x128xi1>, vector<1x128xf32>
    %c0_7 = arith.constant 0 : index
    %c0_8 = arith.constant 0 : index
    %22 = vector.load %arg2[%c0_7, %c0_8] : memref<2x4xf32, #tpu.memory_space<vmem>>, vector<2x4xf32>
    %23 = vector.shape_cast %22 : vector<2x4xf32> to vector<1x2x4xf32>
    %cst_9 = arith.constant dense<0.000000e+00> : vector<1xf32>
    %24 = vector.multi_reduction <add>, %23, %cst_9 [1, 2] : vector<1x2x4xf32> to vector<1xf32>
    %25 = vector.shape_cast %24 : vector<1xf32> to vector<1x1x1xf32>
    %26 = vector.extract %25[0, 0, 0] : f32 from vector<1x1x1xf32>
    %c2_i32 = arith.constant 2 : i32
    %27 = vector.broadcast %c2_i32 : i32 to vector<1x128xi32>
    %28 = arith.cmpi eq, %0, %27 : vector<1x128xi32>
    %cst_10 = arith.constant 1.250000e-01 : f32
    %29 = arith.mulf %26, %cst_10 : f32
    %30 = vector.broadcast %29 : f32 to vector<1x128xf32>
    %31 = arith.select %28, %30, %21 : vector<1x128xi1>, vector<1x128xf32>
    %c0_11 = arith.constant 0 : index
    %c0_12 = arith.constant 0 : index
    %32 = vector.load %arg3[%c0_11, %c0_12] : memref<1x2xf32, #tpu.memory_space<vmem>>, vector<1x2xf32>
    %33 = vector.shape_cast %32 : vector<1x2xf32> to vector<1x1x2xf32>
    %cst_13 = arith.constant dense<0.000000e+00> : vector<1xf32>
    %34 = vector.multi_reduction <add>, %33, %cst_13 [1, 2] : vector<1x1x2xf32> to vector<1xf32>
    %35 = vector.shape_cast %34 : vector<1xf32> to vector<1x1x1xf32>
    %36 = vector.extract %35[0, 0, 0] : f32 from vector<1x1x1xf32>
    %c3_i32 = arith.constant 3 : i32
    %37 = vector.broadcast %c3_i32 : i32 to vector<1x128xi32>
    %38 = arith.cmpi eq, %0, %37 : vector<1x128xi32>
    %cst_14 = arith.constant 5.000000e-01 : f32
    %39 = arith.mulf %36, %cst_14 : f32
    %40 = vector.broadcast %39 : f32 to vector<1x128xf32>
    %41 = arith.select %38, %40, %31 : vector<1x128xi1>, vector<1x128xf32>
    %c0_15 = arith.constant 0 : index
    %c0_16 = arith.constant 0 : index
    %42 = vector.load %arg4[%c0_15, %c0_16] : memref<1x128xf32, #tpu.memory_space<vmem>>, vector<1x128xf32>
    tpu.vector_store %arg4[%c0_15, %c0_16], %41 {strides = array<i32>} : memref<1x128xf32, #tpu.memory_space<vmem>>, vector<1x128xf32>,
    return
  }
}

</mosaic_0001>

<llo_original>
// kernel: tpu_custom_call.1
$region0: #{tpu_custom_call.1}
  #allocation0 [shape = 'u32[]', space=smem, size = 0x4, offset = 0x4, fixed_abs, tag = 'smem constant byte address 0x4 - core index']
  #allocation1 [shape = 'u32[144,128]{1,0:T(1,128)}', space=vmem, size = 0x12000, scoped, tag = 'internal scratch']
  %s0 = inlined_call_operand.hbm [shape: f32[2,16], index: 0, kind: input, shape index: {}]
  %s1 = inlined_call_operand.vmem [shape: f32[2,8], index: 1, kind: input, shape index: {}]
  %s2 = inlined_call_operand.vmem [shape: f32[2,4], index: 2, kind: input, shape index: {}]
  %s3 = inlined_call_operand.vmem [shape: f32[1,2], index: 3, kind: input, shape index: {}]
  %s4 = inlined_call_operand.hbm [shape: f32[1,128], index: 4, kind: output, shape index: {}]
  %s5 = sld [smem:[#allocation0]]
  $region30: #{tpu_custom_call.1} parent=0
    _
  %s7 = ssub.s32 1, %s5
  %s8 = scalar_select 0, %s7, %s5
  $region1: #{tpu_custom_call.1} parent=0
    #allocation2 [shape = 'u8[1024]{0}', space=vmem, size = 0x400, scoped, tag = 'input window, operand 0, single buffered']
    #allocation3 [shape = 's32[1]{0}', space=sflag, size = 0x4, scoped, tag = 'scoped memory for tpu_custom_call.1']
    #allocation4 [shape = 's32[1]{0}', space=sflag, size = 0x4, scoped, tag = 'scoped memory for tpu_custom_call.1']
    #allocation5 [shape = 'u8[512]{0}', space=vmem, size = 0x400, scoped, tag = 'output window, operand 0, single buffered']
    %9 = vsyncpa [#allocation3], 0
    %10 = vsyncpa [#allocation4], 0
    // Predicated region
    $region2: #{tpu_custom_call.1} parent=1 // pred_check
      _
    $region3: #{tpu_custom_call.1} parent=1 // pred_check_branch
      %12 = sbr.rel (0) target = $region5
    $region4: #{tpu_custom_call.1} parent=1 // pred_region
      %s14 = ssub.s32 32, 32
      %15 = vsyncadd [#allocation3], %s14
      %s17 = sshll.u32 [#allocation2], 4
      %s18 = int_to_ptr.vmem [resolvable:$true] %s17
      %20 = dma.hbm_to_vmem [thread:$0]  %s0, 32, %s18, [#allocation3]
    $region5: #{tpu_custom_call.1} parent=1 // pred_fallthru
      _
    // Predicated region
    $region6: #{tpu_custom_call.1} parent=1 // pred_check
      _
    $region7: #{tpu_custom_call.1} parent=1 // pred_check_branch
      %22 = sbr.rel (0) target = $region9
    $region8: #{tpu_custom_call.1} parent=1 // pred_region
      _
    $region9: #{tpu_custom_call.1} parent=1 // pred_fallthru
      _
    // Predicated region
    $region10: #{tpu_custom_call.1} parent=1 // pred_check
      _
    $region11: #{tpu_custom_call.1} parent=1 // pred_check_branch
      %24 = sbr.rel (0) target = $region13
    $region12: #{tpu_custom_call.1} parent=1 // pred_region
      _
    $region13: #{tpu_custom_call.1} parent=1 // pred_fallthru
      _
    // Predicated region
    $region14: #{tpu_custom_call.1} parent=1 // pred_check
      _
    $region15: #{tpu_custom_call.1} parent=1 // pred_check_branch
      %26 = sbr.rel (0) target = $region17
    $region16: #{tpu_custom_call.1} parent=1 // pred_region
      _
    $region17: #{tpu_custom_call.1} parent=1 // pred_fallthru
      _
    // Predicated region
    $region18: #{tpu_custom_call.1} parent=1 // pred_check
      _
    $region19: #{tpu_custom_call.1} parent=1 // pred_check_branch
      %28 = sbr.rel (0) target = $region21
    $region20: #{tpu_custom_call.1} parent=1 // pred_region
      %29 = dma.done [#allocation3], 32
    $region21: #{tpu_custom_call.1} parent=1 // pred_fallthru
      _
    %v30 = vlaneseq
    %v31 = vand.u32 %v30, 127
    %v32 = vld [vmem:[#allocation2] sm:$0x3]
    %vm33 = vcmask 123904
    %v34 = vsel %vm33, %v32, 0.0
    %35 = vadd.xlane.f32.xlu0 %v34
    %v36 = vpop.xlane.xlu0 %35
    %v37 = vrot.slane %v36, 4
    %v38 = vadd.f32 %v36, %v37
    %v39 = vrot.slane %v38, 2
    %v40 = vadd.f32 %v38, %v39
    %v41 = vrot.slane %v40, 1
    %v42 = vadd.f32 %v40, %v41
    %s43 = vtos %v42
    %vm44 = vcmp.eq.s32.totalorder %v31, 0
    %s45 = smul.f32 %s43, 0.03125
    %v46 = vstv %s45
    %v47 = vsel %vm44, %v46, 0.0
    %v48 = vld [vmem:[%s1] sm:$0x3]
    %vm49 = vcmask 58368
    %v50 = vsel %vm49, %v48, 0.0
    %51 = vadd.xlane.f32.xlu0 %v50
    %v52 = vpop.xlane.xlu0 %51
    %v53 = vrot.slane %v52, 4
    %v54 = vadd.f32 %v52, %v53
    %v55 = vrot.slane %v54, 2
    %v56 = vadd.f32 %v54, %v55
    %v57 = vrot.slane %v56, 1
    %v58 = vadd.f32 %v56, %v57
    %s59 = vtos %v58
    %vm60 = vcmp.eq.s32.totalorder %v31, 1
    %s61 = smul.f32 %s59, 0.0625
    %v62 = vstv %s61
    %v63 = vsel %vm60, %v62, %v47
    %v64 = vld [vmem:[%s2] sm:$0x3]
    %vm65 = vcmask 25600
    %v66 = vsel %vm65, %v64, 0.0
    %67 = vadd.xlane.f32.xlu0 %v66
    %v68 = vpop.xlane.xlu0 %67
    %v69 = vrot.slane %v68, 4
    %v70 = vadd.f32 %v68, %v69
    %v71 = vrot.slane %v70, 2
    %v72 = vadd.f32 %v70, %v71
    %v73 = vrot.slane %v72, 1
    %v74 = vadd.f32 %v72, %v73
    %s75 = vtos %v74
    %vm76 = vcmp.eq.s32.totalorder %v31, 2
    %s77 = smul.f32 %s75, 0.125
    %v78 = vstv %s77
    %v79 = vsel %vm76, %v78, %v63
    %v80 = vld [vmem:[%s3] sm:$0x1]
    %vm81 = vcmask 8192
    %v82 = vsel %vm81, %v80, 0.0
    %83 = vadd.xlane.f32.xlu0 %v82
    %v84 = vpop.xlane.xlu0 %83
    %v85 = vrot.slane %v84, 4
    %v86 = vadd.f32 %v84, %v85
    %v87 = vrot.slane %v86, 2
    %v88 = vadd.f32 %v86, %v87
    %v89 = vrot.slane %v88, 1
    %v90 = vadd.f32 %v88, %v89
    %s91 = vtos %v90
    %vm92 = vcmp.eq.s32.totalorder %v31, 3
    %s93 = smul.f32 %s91, 0.5
    %v94 = vstv %s93
    %v95 = vsel %vm92, %v94, %v79
    %96 = vst [vmem:[#allocation5] sm:$0x1] %v95
    // Predicated region
    $region22: #{tpu_custom_call.1} parent=1 // pred_check
      _
    $region23: #{tpu_custom_call.1} parent=1 // pred_check_branch
      %98 = sbr.rel (0) target = $region25
    $region24: #{tpu_custom_call.1} parent=1 // pred_region
      %s100 = ssub.s32 16, 16
      %101 = vsyncadd [#allocation4], %s100
      %s103 = sshll.u32 [#allocation5], 4
      %s104 = int_to_ptr.vmem [resolvable:$true] %s103
      %106 = dma.vmem_to_hbm [thread:$0]  %s104, 16, %s4, [#allocation4]
    $region25: #{tpu_custom_call.1} parent=1 // pred_fallthru
      _
    // Predicated region
    $region26: #{tpu_custom_call.1} parent=1 // pred_check
      _
    $region27: #{tpu_custom_call.1} parent=1 // pred_check_branch
      %108 = sbr.rel (0) target = $region29
    $region28: #{tpu_custom_call.1} parent=1 // pred_region
      %109 = dma.done [#allocation4], 16
    $region29: #{tpu_custom_call.1} parent=1 // pred_fallthru
      _
    %110 = vsyncpa [#allocation3], 1
    %111 = vsyncpa [#allocation4], 1

</llo_original>
